<compile_context>
chip_gen: v5e
topology: v5e:2x2
jax: 0.10.0
libtpu: 0.0.40
codegen_flags: <defaults>
</compile_context>

<pallas_src>
import functools
import random

import numpy as np
import jax
import jax.numpy as jnp
from jax import lax
from jax.experimental import pallas as pl
from jax.experimental.pallas import tpu as pltpu


# ---------------------------------------------------------------------------
# MXU operand dtype.  Set to jnp.bfloat16 on v6e/v7x for larger graphs
# (bf16 MXU operands, f32 accumulation via preferred_element_type).  Kept at
# f32 here: marginal at N=16, keeps exact f32 numerics, and all elementwise /
# softmax math plus +/-1e30 sentinels must stay f32 anyway (v5e has no bf16
# VPU/EUP; sentinels overflow bf16).
# ---------------------------------------------------------------------------
_MXU_DTYPE = jnp.float32


def _mx(a):
    return a.astype(_MXU_DTYPE)


# ---------------------------------------------------------------------------
# BlockSpec helper: full-array blocks, empty grid.
# ---------------------------------------------------------------------------
def _full_specs(shapes):
    return [pl.BlockSpec(s, lambda *_, nd=len(s): (0,) * nd) for s in shapes]


# ---------------------------------------------------------------------------
# sim = head_matrix @ body_matrix^T
# ---------------------------------------------------------------------------
def _sim_kernel(h_ref, b_ref, o_ref):
    o_ref[...] = lax.dot_general(
        _mx(h_ref[...]), _mx(b_ref[...]),
        (((1,), (1,)), ((), ())),
        preferred_element_type=jnp.float32)


def similarity(head_mat, body_mat):
    nh = head_mat.shape[0]
    nb = body_mat.shape[0]
    return pl.pallas_call(
        _sim_kernel,
        out_shape=jax.ShapeDtypeStruct((nh, nb), jnp.float32),
        in_specs=_full_specs([head_mat.shape, body_mat.shape]),
        out_specs=pl.BlockSpec((nh, nb), lambda *_: (0, 0)),
    )(head_mat, body_mat)


# ---------------------------------------------------------------------------
# GAT layer (GATConv-style, heads averaged) + tanh, fused in one kernel.
# Heads are stacked into a single x @ W_stack matmul; the attention vectors
# are pre-folded into the weights host-side (v_src = W@a_src, v_dst = W@a_dst)
# so e_src / e_dst come straight out of small matmuls (no XLU reductions).
# ---------------------------------------------------------------------------
def _gat_kernel(x_ref, w_ref, vsrc_ref, vdst_ref, b_ref, adj_ref, o_ref,
                *, heads, fout):
    x = x_ref[...]                                # [N, Fin]
    adj = adj_ref[...]                            # [N, N]
    n = x.shape[0]
    xm = _mx(x)
    hh_all = jnp.dot(xm, _mx(w_ref[...]),
                     preferred_element_type=jnp.float32)          # [N, heads*Fout]
    e_src = jnp.dot(xm, _mx(vsrc_ref[...]),
                    preferred_element_type=jnp.float32)           # [N, heads]
    e_dst = lax.dot_general(_mx(vdst_ref[...]), xm,
                            (((1,), (1,)), ((), ())),
                            preferred_element_type=jnp.float32)   # [heads, N]
    acc = jnp.zeros((n, fout), jnp.float32)
    for h in range(heads):                        # static unroll, heads == 2
        scores = e_src[:, h:h + 1] + e_dst[h:h + 1, :]            # [N, N]
        scores = jnp.where(scores > 0, scores, 0.2 * scores)      # LeakyReLU(0.2)
        # masked softmax:  exp(s - rowmax) * adj  (softmax is shift-invariant,
        # adj has self-loops -> every row has a nonzero entry)
        p = jnp.exp(scores - jnp.max(scores, axis=-1, keepdims=True)) * adj
        alpha = p * pl.reciprocal(jnp.sum(p, axis=-1, keepdims=True), approx=True)
        hh_h = hh_all[:, h * fout:(h + 1) * fout]                 # [N, Fout]
        acc = acc + jnp.dot(_mx(alpha), _mx(hh_h),
                            preferred_element_type=jnp.float32)
    o_ref[...] = jnp.tanh(acc * (1.0 / heads) + b_ref[...])       # fused .tanh()


def gat_layer(x, params, adj):
    w_stack, vsrc, vdst, bias = params
    heads = vsrc.shape[1]
    fout = bias.shape[1]
    n = x.shape[0]
    kernel = functools.partial(_gat_kernel, heads=heads, fout=fout)
    args = (x, w_stack, vsrc, vdst, bias, adj)
    return pl.pallas_call(
        kernel,
        out_shape=jax.ShapeDtypeStruct((n, fout), jnp.float32),
        in_specs=_full_specs([a.shape for a in args]),
        out_specs=pl.BlockSpec((n, fout), lambda *_: (0, 0)),
    )(*args)


# ---------------------------------------------------------------------------
# Batched masked max / min / mean pooling.
# One pallas_call with grid=(S,) pools ALL subgraphs (12 pos + 12 neg + 1
# global) in a single dispatch; masks are [S, N, 1].  The S axis is marked
# "parallel" so v7x shards it across both TensorCores (no-op on v5e/v6e).
# ---------------------------------------------------------------------------
def _pool_kernel(x_ref, m_ref, o_ref):
    x = x_ref[...]                                 # [N, F]
    m = m_ref[0]                                   # [N, 1]
    valid = m > 0.5
    s_max = jnp.max(jnp.where(valid, x, -1e30), axis=0, keepdims=True)   # [1, F]
    s_min = jnp.min(jnp.where(valid, x, 1e30), axis=0, keepdims=True)    # [1, F]
    cnt = jnp.maximum(jnp.sum(m, axis=0, keepdims=True), 1.0)            # [1, 1]
    s_mean = jnp.sum(x * m, axis=0, keepdims=True) * pl.reciprocal(cnt, approx=True)
    o_ref[0] = jnp.concatenate([s_max, s_min, s_mean], axis=-1)          # [1, 3F]


def batched_pool(x, masks):
    """x: [N, F] float32, masks: [S, N, 1] float32 -> [S, 3F]."""
    n, f = x.shape
    s = masks.shape[0]
    out = pl.pallas_call(
        _pool_kernel,
        grid=(s,),
        out_shape=jax.ShapeDtypeStruct((s, 1, 3 * f), jnp.float32),
        in_specs=[pl.BlockSpec((n, f), lambda i: (0, 0)),
                  pl.BlockSpec((1, n, 1), lambda i: (i, 0, 0))],
        out_specs=pl.BlockSpec((1, 1, 3 * f), lambda i: (i, 0, 0)),
        compiler_params=pltpu.CompilerParams(dimension_semantics=("parallel",)),
    )(x, masks)
    return out.reshape(s, 3 * f)


# ---------------------------------------------------------------------------
# MultiHeadAttention (sigmoid-scores variant) fused in one kernel.
# Per-head lane slices are replaced by a block-diagonal selector `sel` [E, H]:
#   scores[s, h] = ((kp * qp) @ sel)[s, h]  (lane-dense, one matmul)
#   out[0, d]    = sum_s (w @ sel^T)[s, d] * vp[s, d]
# indicator is a compile-time Python int (0 or 1), matching the forward.
# ---------------------------------------------------------------------------
def _mha_kernel(q_ref, kv_ref, wq_ref, bq_ref, wk_ref, bk_ref, wv_ref, bv_ref,
                wo_ref, bo_ref, sel_ref, o_ref, *, num_heads, indicator):
    q = q_ref[...]                                 # [1, E]
    kv = kv_ref[...]                               # [S, E]
    e = q.shape[-1]
    hd = e // num_heads
    scale = 1.0 / (hd ** 0.5)
    qm, km = _mx(q), _mx(kv)
    qp = jnp.dot(qm, _mx(wq_ref[...]), preferred_element_type=jnp.float32) + bq_ref[...]
    kp = jnp.dot(km, _mx(wk_ref[...]), preferred_element_type=jnp.float32) + bk_ref[...]
    vp = jnp.dot(km, _mx(wv_ref[...]), preferred_element_type=jnp.float32) + bv_ref[...]
    sel = sel_ref[...]                             # [E, H] block-diagonal ones
    scores = jnp.dot(_mx(kp * qp), _mx(sel),
                     preferred_element_type=jnp.float32) * scale          # [S, H]
    w = jax.nn.sigmoid(scores)
    if indicator != 0:
        w = 1.0 - w
    # softmax over the key dim (S) per head; shift-invariant max-subtract
    w = w - jnp.max(w, axis=0, keepdims=True)
    p = jnp.exp(w)
    w = p * pl.reciprocal(jnp.sum(p, axis=0, keepdims=True), approx=True)  # [S, H]
    # dropout(0.2) is identity in eval mode
    w_full = lax.dot_general(w, sel, (((1,), (1,)), ((), ())),
                             preferred_element_type=jnp.float32)           # [S, E]
    attn = jnp.sum(w_full * vp, axis=0, keepdims=True)                     # [1, E]
    o_ref[...] = jnp.dot(_mx(attn), _mx(wo_ref[...]),
                         preferred_element_type=jnp.float32) + bo_ref[...]


def multihead_attention(q, kv, params, sel, num_heads, indicator):
    wq, bq, wk, bk, wv, bv, wo, bo = params
    e = q.shape[-1]
    kernel = functools.partial(_mha_kernel, num_heads=num_heads, indicator=indicator)
    args = (q, kv, wq, bq, wk, bk, wv, bv, wo, bo, sel)
    return pl.pallas_call(
        kernel,
        out_shape=jax.ShapeDtypeStruct((1, e), jnp.float32),
        in_specs=_full_specs([a.shape for a in args]),
        out_specs=pl.BlockSpec((1, e), lambda *_: (0, 0)),
    )(*args)


# ---------------------------------------------------------------------------
# Jitted device stages (dispatch-amortized).
# ---------------------------------------------------------------------------
@jax.jit
def _gat_stacks(body_matrix, head_matrix, b_adj, h_adj,
                conv1, conv2, conv3, head_conv1, head_conv2):
    b = gat_layer(body_matrix, conv1, b_adj)
    b = gat_layer(b, conv2, b_adj)
    b = gat_layer(b, conv3, b_adj)
    h = gat_layer(head_matrix, head_conv1, h_adj)
    h = gat_layer(h, head_conv2, h_adj)
    return b, h


@functools.partial(jax.jit, static_argnames=("n_pos", "n_neg", "num_heads"))
def _pool_and_attend(b, h, body_masks, head_masks, mha_params, sel,
                     *, n_pos, n_neg, num_heads):
    pooled_b = batched_pool(b, body_masks)         # [n_pos+n_neg+1, 96]
    head_pooled = batched_pool(h, head_masks)      # [1, 96]
    pos = pooled_b[:n_pos]
    neg = pooled_b[n_pos:n_pos + n_neg]
    global_rep = pooled_b[n_pos + n_neg:]
    pos_rep = multihead_attention(head_pooled, pos, mha_params, sel, num_heads, 0)
    neg_rep = multihead_attention(head_pooled, neg, mha_params, sel, num_heads, 1)
    return head_pooled, pos_rep, neg_rep, global_rep


# ---------------------------------------------------------------------------
# Deterministic parameter init (synthetic; matches the module's layer shapes).
# ---------------------------------------------------------------------------
def init_gat(key, fin, fout, heads=2):
    k1, k2, k3, k4 = jax.random.split(key, 4)
    scale = 1.0 / np.sqrt(fin)
    w = jax.random.normal(k1, (heads, fin, fout), jnp.float32) * scale
    a_src = jax.random.normal(k2, (heads, fout), jnp.float32) * 0.1
    a_dst = jax.random.normal(k3, (heads, fout), jnp.float32) * 0.1
    b = jax.random.normal(k4, (1, fout), jnp.float32) * 0.01
    return w, a_src, a_dst, b


def fold_gat_params(params):
    """Fold per-head weights/attention vectors into matmul-friendly tensors."""
    w, a_src, a_dst, bias = params                       # [H,Fin,Fout], [H,Fout], [H,Fout], [1,Fout]
    heads, fin, fout = w.shape
    w_stack = jnp.transpose(w, (1, 0, 2)).reshape(fin, heads * fout)   # [Fin, H*Fout]
    vsrc = jnp.einsum('hif,hf->ih', w, a_src)            # [Fin, H]  (x@vsrc -> e_src)
    vdst = jnp.einsum('hif,hf->hi', w, a_dst)            # [H, Fin]  (vdst@x^T -> e_dst)
    return w_stack, vsrc, vdst, bias


def init_linear(key, din, dout):
    k1, k2 = jax.random.split(key)
    scale = 1.0 / np.sqrt(din)
    w = jax.random.uniform(k1, (din, dout), jnp.float32, -scale, scale)
    b = jax.random.uniform(k2, (1, dout), jnp.float32, -scale, scale)
    return w, b


# ---------------------------------------------------------------------------
# Host-side graph / index utilities (same semantics as the PyTorch forward).
# ---------------------------------------------------------------------------
def edge_list_to_adj(edge_list, n):
    adj = np.zeros((n, n), np.float32)
    for u, v in edge_list:
        adj[int(u), int(v)] = 1.0
        adj[int(v), int(u)] = 1.0
    np.fill_diagonal(adj, 1.0)                     # self-loops (GATConv default)
    return jnp.asarray(adj)


def adjacency_lists(edge_list, n):
    nbrs = {i: set() for i in range(n)}
    for u, v in edge_list:
        nbrs[int(u)].add(int(v))
        nbrs[int(v)].add(int(u))
    return nbrs


def ego_nodes(nbrs, center, radius):
    # nodes within `radius` hops of `center` (nx.ego_graph on an undirected graph)
    visited = {int(center)}
    frontier = {int(center)}
    for _ in range(radius):
        nxt = set()
        for u in frontier:
            nxt |= nbrs[u]
        frontier = nxt - visited
        visited |= nxt
    return sorted(visited)


def build_subgraph_masks(nbrs, centers, radius, n, append_global=False):
    rows = []
    for c in centers:
        mask = np.zeros((n,), np.float32)
        mask[ego_nodes(nbrs, c, radius)] = 1.0
        rows.append(mask)
    if append_global:
        rows.append(np.ones((n,), np.float32))
    return jnp.asarray(np.stack(rows, 0)[:, :, None])   # [S, N, 1]


# ---------------------------------------------------------------------------
# DocLSTM forward orchestration.
# ---------------------------------------------------------------------------
class DocLSTMPallas:
    def __init__(self, in_dim, mem_dim, sparsity, freeze, max_num_para,
                 max_num_sent, max_num_word, num_atten_head, thresold, no_radius,
                 seed=0):
        self.in_dim = in_dim
        self.mem_dim = mem_dim
        self.att_head = num_atten_head
        self.radius = no_radius
        self.thresold = thresold
        keys = jax.random.split(jax.random.PRNGKey(seed), 16)
        self.conv1 = fold_gat_params(init_gat(keys[0], in_dim, 128, 2))
        self.conv2 = fold_gat_params(init_gat(keys[1], 128, 64, 2))
        self.conv3 = fold_gat_params(init_gat(keys[2], 64, 32, 2))
        self.head_conv1 = fold_gat_params(init_gat(keys[3], in_dim, 128, 2))
        self.head_conv2 = fold_gat_params(init_gat(keys[4], 128, 32, 2))
        wq, bq = init_linear(keys[5], 96, 96)
        wk, bk = init_linear(keys[6], 96, 96)
        wv, bv = init_linear(keys[7], 96, 96)
        wo, bo = init_linear(keys[8], 96, 96)
        self.mha_params = (wq, bq, wk, bk, wv, bv, wo, bo)
        # block-diagonal head selector [E, H]
        e, nh = 96, num_atten_head
        hd = e // nh
        sel = np.zeros((e, nh), np.float32)
        for i in range(nh):
            sel[i * hd:(i + 1) * hd, i] = 1.0
        self.sel = jnp.asarray(sel)

    # replicate the top-k / dedup / random-fill index selection on the host
    def _select_indices(self, sim, largest, n_body):
        k = 3
        if largest:
            inds = np.argsort(-sim, axis=1)[:, :k]
        else:
            inds = np.argsort(sim, axis=1)[:, :k]
        flat = inds.T.flatten().tolist()
        dedup = list(dict.fromkeys(int(i) for i in flat))
        if len(dedup) > 12:
            return dedup[:12]
        out = dedup
        rand_num = random.sample(range(1, n_body), n_body - len(out))
        for i in rand_num:
            if i not in out:
                out.append(i)
                if len(out) == 12:
                    break
        return out

    def forward(self, body):
        b_edge_list = np.asarray(body['body']['adj'])     # [E, 2]
        b_feature = body['body']['feature']               # list of [1, in_dim]
        body_matrix = jnp.concatenate(b_feature, axis=0)
        h_edge_list = np.asarray(body['head']['adj'])
        h_feature = body['head']['feature']
        head_matrix = jnp.concatenate(h_feature, axis=0)

        n_body = body_matrix.shape[0]
        n_head = head_matrix.shape[0]

        # dense adjacency (undirected + self-loops), host-built
        b_adj = edge_list_to_adj(b_edge_list, n_body)
        h_adj = edge_list_to_adj(h_edge_list, n_head)

        # 1) dispatch similarity (async), 2) dispatch the jitted GAT stacks
        #    (async), 3) only then pull sim to the host — the host top-k /
        #    ego-BFS below overlaps GAT compute on device.
        sim_dev = similarity(head_matrix, body_matrix)
        b, h = _gat_stacks(body_matrix, head_matrix, b_adj, h_adj,
                           self.conv1, self.conv2, self.conv3,
                           self.head_conv1, self.head_conv2)
        sim = np.asarray(jax.device_get(sim_dev))

        indexs = self._select_indices(sim, largest=True, n_body=n_body)
        neg_indexs = self._select_indices(sim, largest=False, n_body=n_body)

        # ego-graph membership masks (host BFS, replaces networkx)
        nbrs = adjacency_lists(b_edge_list, n_body)
        body_masks = build_subgraph_masks(
            nbrs, list(indexs) + list(neg_indexs), self.radius, n_body,
            append_global=True)                            # [P+Q+1, N_body, 1]
        head_masks = jnp.ones((1, n_head, 1), jnp.float32)

        head_pooled, pos_rep, neg_rep, global_rep = _pool_and_attend(
            b, h, body_masks, head_masks, self.mha_params, self.sel,
            n_pos=len(indexs), n_neg=len(neg_indexs), num_heads=self.att_head)

        return head_pooled, pos_rep, neg_rep, global_rep


# ---------------------------------------------------------------------------
# Demo
# ---------------------------------------------------------------------------
if __name__ == "__main__":
    random.seed(0)
    key = jax.random.PRNGKey(0)
    in_dim = 64
    n_body, n_head = 16, 4

    kf, kh = jax.random.split(key)
    b_feats = [jax.random.normal(jax.random.fold_in(kf, i), (1, in_dim), jnp.float32)
               for i in range(n_body)]
    h_feats = [jax.random.normal(jax.random.fold_in(kh, i), (1, in_dim), jnp.float32)
               for i in range(n_head)]

    b_edges = [[i, (i + 1) % n_body] for i in range(n_body)] + \
              [[0, 8], [2, 10], [4, 12], [6, 14]]
    h_edges = [[i, (i + 1) % n_head] for i in range(n_head)]

    body = {
        'body': {'adj': np.asarray(b_edges, np.int32), 'feature': b_feats},
        'head': {'adj': np.asarray(h_edges, np.int32), 'feature': h_feats},
    }

    model = DocLSTMPallas(in_dim=in_dim, mem_dim=32, sparsity=None, freeze=False,
                          max_num_para=4, max_num_sent=8, max_num_word=16,
                          num_atten_head=3, thresold=0.5, no_radius=1)

    outs = model.forward(body)
    for o in outs:
        jax.block_until_ready(o)
    assert all(o.shape == (1, 96) for o in outs)
    print("KERNEL_OK")
</pallas_src>

<mosaic_0001>
module attributes {stable_mosaic.version = 11 : i64} {
  func.func @_sim_kernel(%arg0: memref<4x64xf32, #tpu.memory_space<vmem>>, %arg1: memref<16x64xf32, #tpu.memory_space<vmem>>, %arg2: memref<4x16xf32, #tpu.memory_space<vmem>>) attributes {dimension_semantics = [], scalar_prefetch = 0 : i64, scratch_operands = 0 : i64, tpu.core_type = #tpu.core_type<tc>} {
    %c0 = arith.constant 0 : index
    %c0_0 = arith.constant 0 : index
    %0 = vector.load %arg0[%c0, %c0_0] : memref<4x64xf32, #tpu.memory_space<vmem>>, vector<4x64xf32>
    %c0_1 = arith.constant 0 : index
    %c0_2 = arith.constant 0 : index
    %1 = vector.load %arg1[%c0_1, %c0_2] : memref<16x64xf32, #tpu.memory_space<vmem>>, vector<16x64xf32>
    %cst = arith.constant dense<0.000000e+00> : vector<4x16xf32>
    %2 = tpu.matmul %0, %1, %cst {dimension_numbers = #tpu.dot_dimension_numbers<[1], [1], [0], [0], [0, 0, 1, 0], [], []>} : vector<4x64xf32>, vector<16x64xf32>, vector<4x16xf32> -> vector<4x16xf32>
    %c0_3 = arith.constant 0 : index
    %c0_4 = arith.constant 0 : index
    %3 = vector.load %arg2[%c0_3, %c0_4] : memref<4x16xf32, #tpu.memory_space<vmem>>, vector<4x16xf32>
    tpu.vector_store %arg2[%c0_3, %c0_4], %2 {strides = array<i32>} : memref<4x16xf32, #tpu.memory_space<vmem>>, vector<4x16xf32>,
    return
  }
}

</mosaic_0001>

<llo_original>
// kernel: tpu_custom_call.1
$region0: #{tpu_custom_call.1}
  #allocation0 [shape = 'u32[]', space=smem, size = 0x4, offset = 0x4, fixed_abs, tag = 'smem constant byte address 0x4 - core index']
  #allocation1 [shape = 'u32[72,128]{1,0:T(1,128)}', space=vmem, size = 0x9000, scoped, tag = 'internal scratch']
  %s0 = inlined_call_operand.hbm [shape: f32[4,64], index: 0, kind: input, shape index: {}]
  %s1 = inlined_call_operand.hbm [shape: f32[16,64], index: 1, kind: input, shape index: {}]
  %s2 = inlined_call_operand.hbm [shape: f32[4,16], index: 2, kind: output, shape index: {}]
  %s3 = sld [smem:[#allocation0]]
  $region26: #{tpu_custom_call.1} parent=0
    _
  %s5 = ssub.s32 1, %s3
  %s6 = scalar_select 0, %s5, %s3
  $region1: #{tpu_custom_call.1} parent=0
    #allocation2 [shape = 'u8[2048]{0}', space=vmem, size = 0x800, scoped, tag = 'input window, operand 0, single buffered']
    #allocation3 [shape = 's32[1]{0}', space=sflag, size = 0x4, scoped, tag = 'scoped memory for tpu_custom_call.1']
    #allocation4 [shape = 's32[1]{0}', space=sflag, size = 0x4, scoped, tag = 'scoped memory for tpu_custom_call.1']
    #allocation5 [shape = 'u8[8192]{0}', space=vmem, size = 0x2000, scoped, tag = 'input window, operand 1, single buffered']
    #allocation6 [shape = 's32[1]{0}', space=sflag, size = 0x4, scoped, tag = 'scoped memory for tpu_custom_call.1']
    #allocation7 [shape = 'u8[2048]{0}', space=vmem, size = 0x800, scoped, tag = 'output window, operand 0, single buffered']
    %7 = vsyncpa [#allocation3], 0
    %8 = vsyncpa [#allocation6], 0
    %9 = vsyncpa [#allocation4], 0
    // Predicated region
    $region2: #{tpu_custom_call.1} parent=1 // pred_check
      _
    $region3: #{tpu_custom_call.1} parent=1 // pred_check_branch
      %11 = sbr.rel (0) target = $region5
    $region4: #{tpu_custom_call.1} parent=1 // pred_region
      %13 = vsyncadd [#allocation3], 0
      %s15 = sshll.u32 %s0, 4
      %s16 = int_to_ptr.hbm [resolvable:$true] %s15
      %s17 = sshll.u32 [#allocation2], 4
      %s18 = int_to_ptr.vmem [resolvable:$true] %s17
      %20 = dma.hbm_to_vmem [thread:$0]  %s16, 64, %s18, [#allocation3]
    $region5: #{tpu_custom_call.1} parent=1 // pred_fallthru
      _
    // Predicated region
    $region6: #{tpu_custom_call.1} parent=1 // pred_check
      _
    $region7: #{tpu_custom_call.1} parent=1 // pred_check_branch
      %22 = sbr.rel (0) target = $region9
    $region8: #{tpu_custom_call.1} parent=1 // pred_region
      %24 = vsyncadd [#allocation6], 0
      %s25 = sshll.u32 %s1, 4
      %s26 = int_to_ptr.hbm [resolvable:$true] %s25
      %s27 = sshll.u32 [#allocation5], 4
      %s28 = int_to_ptr.vmem [resolvable:$true] %s27
      %33 = dma.hbm_to_vmem [thread:$0]  %s26, 256, %s28, [#allocation6], 128, 128, 8
    $region9: #{tpu_custom_call.1} parent=1 // pred_fallthru
      _
    // Predicated region
    $region10: #{tpu_custom_call.1} parent=1 // pred_check
      _
    $region11: #{tpu_custom_call.1} parent=1 // pred_check_branch
      %35 = sbr.rel (0) target = $region13
    $region12: #{tpu_custom_call.1} parent=1 // pred_region
      %37 = dma.done [#allocation3], 64
    $region13: #{tpu_custom_call.1} parent=1 // pred_fallthru
      _
    // Predicated region
    $region14: #{tpu_custom_call.1} parent=1 // pred_check
      _
    $region15: #{tpu_custom_call.1} parent=1 // pred_check_branch
      %39 = sbr.rel (0) target = $region17
    $region16: #{tpu_custom_call.1} parent=1 // pred_region
      %41 = dma.done [#allocation6], 256
    $region17: #{tpu_custom_call.1} parent=1 // pred_fallthru
      _
    %v42 = vld [vmem:[#allocation2] sm:$0xf]
    %v43 = vld [vmem:[#allocation5] sm:$0xff]
    %v44 = vld [vmem:[#allocation5 + $0x8] sm:$0xff]
    %vm45 = vcmask 523264
    %v47 = vsel %vm45, %v42, 0
    %v50 = vsel %vm45, %v43, 0
    %v53 = vsel %vm45, %v44, 0
    %55 = vmatpush.xpose.msra.mxu0 0.0
    %56 = vmatpush.xpose.msra.mxu0 0.0
    %57 = vmatpush.xpose.msra.mxu0 0.0
    %58 = vmatpush.xpose.msra.mxu0 0.0
    %59 = vmatpush.xpose.msra.mxu0 0.0
    %60 = vmatpush.xpose.msra.mxu0 0.0
    %61 = vmatpush.xpose.msra.mxu0 0.0
    %62 = vmatpush.xpose.msra.mxu0 0.0
    %63 = vmatpush.xpose.msra.mxu0 0.0
    %64 = vmatpush.xpose.msra.mxu0 0.0
    %65 = vmatpush.xpose.msra.mxu0 0.0
    %66 = vmatpush.xpose.msra.mxu0 0.0
    %67 = vmatpush.xpose.msra.mxu0 0.0
    %68 = vmatpush.xpose.msra.mxu0 0.0
    %69 = vmatpush.xpose.msra.mxu0 %v53
    %70 = vmatpush.xpose.msra.mxu0 %v50
    %71 = vmatmul.f32.gmra.mxu0 %v47
    %v72 = vpop.f32.mrf.mxu0
    %v73 = vadd.f32 0.0, %v72
    %74 = vdwg.mxu0
    %vm75 = vcmask 125952
    %76 = vst.msk [vmem:[#allocation7] sm:$0xf] %vm75, %v73
    // Predicated region
    $region18: #{tpu_custom_call.1} parent=1 // pred_check
      _
    $region19: #{tpu_custom_call.1} parent=1 // pred_check_branch
      %78 = sbr.rel (0) target = $region21
    $region20: #{tpu_custom_call.1} parent=1 // pred_region
      %80 = vsyncadd [#allocation4], 0
      %s82 = sshll.u32 [#allocation7], 4
      %s83 = int_to_ptr.vmem [resolvable:$true] %s82
      %s84 = sshll.u32 %s2, 4
      %s85 = int_to_ptr.hbm [resolvable:$true] %s84
      %87 = dma.vmem_to_hbm [thread:$0]  %s83, 64, %s85, [#allocation4]
    $region21: #{tpu_custom_call.1} parent=1 // pred_fallthru
      _
    // Predicated region
    $region22: #{tpu_custom_call.1} parent=1 // pred_check
      _
    $region23: #{tpu_custom_call.1} parent=1 // pred_check_branch
      %89 = sbr.rel (0) target = $region25
    $region24: #{tpu_custom_call.1} parent=1 // pred_region
      %91 = dma.done [#allocation4], 64
    $region25: #{tpu_custom_call.1} parent=1 // pred_fallthru
      _
    %92 = vsyncpa [#allocation3], 1
    %93 = vsyncpa [#allocation6], 1
    %94 = vsyncpa [#allocation4], 1

</llo_original>
